<compile_context>
chip_gen: v7x
topology: tpu7x:2x2x1
jax: 0.10.0
libtpu: 0.0.40
codegen_flags: <defaults>
</compile_context>

<pallas_src>
import numpy as np
import jax
import jax.numpy as jnp
from jax.experimental import pallas as pl
from jax.experimental.pallas import tpu as pltpu


# ---------------------------------------------------------------------------
# Single live kernel: fc1 = Linear(10, 1) over the last dim.
# ---------------------------------------------------------------------------
def fc1_kernel(x_ref, w_ref, b_ref, o_ref):
    """Linear(K -> 1) over the last dim, lane-dense output row.

    x_ref: (M, K) VMEM  -- x flattened over (N, C, H); M on sublanes.
    w_ref: (K, 1) VMEM  -- fc1 weight as a column, broadcast across lanes.
    b_ref: (1,)   SMEM  -- fc1 bias, read as a scalar.
    o_ref: (1, M) VMEM  -- lane-dense result row.
    """
    # In-kernel transpose (XLU slot) so the large M dimension lands on lanes.
    xt = x_ref[...].astype(jnp.float32).T           # (K, M)
    w = w_ref[...].astype(jnp.float32)              # (K, 1) -> broadcast over lanes
    # K = 10 reduction on the VPU (sublane reduce); f32 accumulation.
    row = jnp.sum(xt * w, axis=0, keepdims=True) + b_ref[0]
    o_ref[...] = row.astype(o_ref.dtype)


def fc1_pallas(x, weight, bias):
    # x: (N, C, H, K); weight: (1, K); bias: (1,)
    n, c, h, k = x.shape
    m = n * c * h
    x2 = x.reshape(m, k)            # contiguous reshape: layout-preserving, no copy
    w = weight.reshape(k, 1)        # (K, 1) column for the in-kernel broadcast
    b = bias.reshape(1)             # (1,) scalar for SMEM

    out_row = pl.pallas_call(
        fc1_kernel,
        out_shape=jax.ShapeDtypeStruct((1, m), x.dtype),
        # Grid-less single invocation: no grid, no tiling, no pipelining.
        in_specs=[
            pl.BlockSpec(memory_space=pltpu.MemorySpace.VMEM),   # x2 (M, K)
            pl.BlockSpec(memory_space=pltpu.MemorySpace.VMEM),   # w  (K, 1)
            pl.BlockSpec(memory_space=pltpu.MemorySpace.SMEM),   # b  (1,) scalar
        ],
        out_specs=pl.BlockSpec(memory_space=pltpu.MemorySpace.VMEM),
        cost_estimate=pl.CostEstimate(
            flops=2 * m * k,
            transcendentals=0,
            bytes_accessed=4 * (m * k + k + 1 + m),
        ),
    )(x2, w, b)                     # (1, M), lane-dense store

    return out_row.reshape(n, c, h, 1)


# ---------------------------------------------------------------------------
# Full forward.  normalize / resize are traced with the same math as the
# reference module but their results are overwritten by fc1(x), so XLA DCE
# eliminates them -- no dead kernels are launched.
# ---------------------------------------------------------------------------
OUT_H, OUT_W = 224, 224


@jax.jit
def net_forward(x, fc1_w, fc1_b):
    mean = jnp.array([0.485, 0.456, 0.406], jnp.float32).reshape(1, 3, 1, 1)
    inv_std = 1.0 / jnp.array([0.229, 0.224, 0.225], jnp.float32).reshape(1, 3, 1, 1)

    # out = self.normalize(x)   (discarded -> DCE'd by XLA)
    out = (x - mean) * inv_std

    # out = self.resize(x)      (nearest to 224x224, discarded -> DCE'd)
    h_in, w_in = x.shape[2], x.shape[3]
    ridx = jnp.floor(jnp.arange(OUT_H) * h_in / OUT_H).astype(jnp.int32)
    cidx = jnp.floor(jnp.arange(OUT_W) * w_in / OUT_W).astype(jnp.int32)
    out = x[:, :, ridx, :][:, :, :, cidx]

    # out = self.fc1(x)         (returned) -- the only live computation
    out = fc1_pallas(x, fc1_w, fc1_b)
    return out


if __name__ == "__main__":
    key = jax.random.PRNGKey(0)
    kx, kw, kb = jax.random.split(key, 3)

    # Input consistent with the module: 3 channels (Normalize), 4-D
    # (interpolate), last dim 10 (Linear(10, 1)).
    N, C, H, W = 2, 3, 8, 10
    x = jax.random.normal(kx, (N, C, H, W), dtype=jnp.float32)

    # Deterministic parameter init for fc1 (shapes from nn.Linear(10, 1)).
    bound = 1.0 / np.sqrt(10.0)
    fc1_w = jax.random.uniform(kw, (1, 10), jnp.float32, -bound, bound)
    fc1_b = jax.random.uniform(kb, (1,), jnp.float32, -bound, bound)

    out = net_forward(x, fc1_w, fc1_b)
    out = jax.block_until_ready(out)

    # Sanity check against plain-JAX reference for the returned value.
    ref = jnp.einsum("nchk,ok->ncho", x, fc1_w) + fc1_b
    assert out.shape == (N, C, H, 1), out.shape
    np.testing.assert_allclose(np.asarray(out), np.asarray(ref), rtol=1e-5, atol=1e-5)

    print("KERNEL_OK")
</pallas_src>

<mosaic_0001>
module attributes {stable_mosaic.version = 11 : i64} {
  func.func @fc1_kernel(%arg0: memref<48x10xf32, #tpu.memory_space<vmem>>, %arg1: memref<10x1xf32, #tpu.memory_space<vmem>>, %arg2: memref<1xf32, #tpu.memory_space<smem>>, %arg3: memref<1x48xf32, #tpu.memory_space<vmem>>) attributes {dimension_semantics = [], scalar_prefetch = 0 : i64, scratch_operands = 0 : i64, tpu.core_type = #tpu.core_type<tc>} {
    %c0 = arith.constant 0 : index
    %c0_0 = arith.constant 0 : index
    %0 = vector.load %arg0[%c0, %c0_0] : memref<48x10xf32, #tpu.memory_space<vmem>>, vector<48x10xf32>
    %1 = tpu.transpose %0, [1, 0] : vector<48x10xf32> -> vector<10x48xf32>
    %c0_1 = arith.constant 0 : index
    %c0_2 = arith.constant 0 : index
    %2 = vector.load %arg1[%c0_1, %c0_2] : memref<10x1xf32, #tpu.memory_space<vmem>>, vector<10x1xf32>
    %3 = vector.broadcast %2 : vector<10x1xf32> to vector<10x48xf32>
    %4 = arith.mulf %1, %3 : vector<10x48xf32>
    %cst = arith.constant dense<0.000000e+00> : vector<48xf32>
    %5 = vector.multi_reduction <add>, %4, %cst [0] : vector<10x48xf32> to vector<48xf32>
    %6 = vector.shape_cast %5 : vector<48xf32> to vector<1x48xf32>
    %c0_3 = arith.constant 0 : index
    %7 = memref.load %arg2[%c0_3] : memref<1xf32, #tpu.memory_space<smem>>
    %8 = vector.broadcast %7 : f32 to vector<1x48xf32>
    %9 = arith.addf %6, %8 : vector<1x48xf32>
    %c0_4 = arith.constant 0 : index
    %c0_5 = arith.constant 0 : index
    %10 = vector.load %arg3[%c0_4, %c0_5] : memref<1x48xf32, #tpu.memory_space<vmem>>, vector<1x48xf32>
    tpu.vector_store %arg3[%c0_4, %c0_5], %9 {strides = array<i32>} : memref<1x48xf32, #tpu.memory_space<vmem>>, vector<1x48xf32>,
    return
  }
}

</mosaic_0001>

<llo_original>
// kernel: net_forward.1
$region0: #{net_forward.1}
  #allocation0 [shape = 'u32[]', space=smem, size = 0x4, offset = 0x4, fixed_abs, tag = 'smem constant byte address 0x4 - core index']
  #allocation1 [shape = 'u32[144,128]{1,0:T(1,128)}', space=vmem, size = 0x12000, scoped, tag = 'internal scratch']
  #allocation2 [shape = 'f32[1]{0:T(128)S(6)}', space=smem, size = 0x200, scoped, tag = 'scoped memory for net_forward.1']
  %s0 = inlined_call_operand.hbm [shape: f32[48,10], index: 0, kind: input, shape index: {}]
  %s1 = inlined_call_operand.vmem [shape: f32[10,1], index: 1, kind: input, shape index: {}]
  %s2 = inlined_call_operand.<no memory space> [shape: f32[1], index: 2, kind: input, shape index: {}]
  %s3 = inlined_call_operand.vmem [shape: f32[1,48], index: 3, kind: output, shape index: {}]
  %s4 = sld [smem:[#allocation0]]
  $region26: #{net_forward.1} parent=0
    _
  %s6 = ssub.s32 1, %s4
  %s7 = scalar_select 0, %s6, %s4
  %8 = sst [smem:[#allocation2]] %s2
  $region1: #{net_forward.1} parent=0
    #allocation3 [shape = 'u8[24576]{0}', space=vmem, size = 0x6000, scoped, tag = 'input window, operand 0, single buffered']
    #allocation4 [shape = 's32[1]{0}', space=sflag, size = 0x4, scoped, tag = 'scoped memory for net_forward.1']
    %9 = vsyncpa [#allocation4], 0
    // Predicated region
    $region2: #{net_forward.1} parent=1 // pred_check
      _
    $region3: #{net_forward.1} parent=1 // pred_check_branch
      %11 = sbr.rel (0) target = $region5
    $region4: #{net_forward.1} parent=1 // pred_region
      %s13 = ssub.s32 768, 768
      %14 = vsyncadd [#allocation4], %s13
      %s15 = sshll.u32 [#allocation3], 4
      %s16 = int_to_ptr.vmem [resolvable:$true] %s15
      %21 = dma.hbm_to_vmem [thread:$0]  %s0, 768, %s16, [#allocation4], 128, 128, 8
    $region5: #{net_forward.1} parent=1 // pred_fallthru
      _
    // Predicated region
    $region6: #{net_forward.1} parent=1 // pred_check
      _
    $region7: #{net_forward.1} parent=1 // pred_check_branch
      %23 = sbr.rel (0) target = $region9
    $region8: #{net_forward.1} parent=1 // pred_region
      _
    $region9: #{net_forward.1} parent=1 // pred_fallthru
      _
    // Predicated region
    $region10: #{net_forward.1} parent=1 // pred_check
      _
    $region11: #{net_forward.1} parent=1 // pred_check_branch
      %25 = sbr.rel (0) target = $region13
    $region12: #{net_forward.1} parent=1 // pred_region
      _
    $region13: #{net_forward.1} parent=1 // pred_fallthru
      _
    // Predicated region
    $region14: #{net_forward.1} parent=1 // pred_check
      _
    $region15: #{net_forward.1} parent=1 // pred_check_branch
      %27 = sbr.rel (0) target = $region17
    $region16: #{net_forward.1} parent=1 // pred_region
      %28 = dma.done [#allocation4], 768
    $region17: #{net_forward.1} parent=1 // pred_fallthru
      _
    %v29 = vld [vmem:[#allocation3] sm:$0xff]
    %v30 = vld [vmem:[#allocation3 + $0x8] sm:$0xff]
    %v31 = vld [vmem:[#allocation3 + $0x10] sm:$0xff]
    %v32 = vld [vmem:[#allocation3 + $0x18] sm:$0xff]
    %v33 = vld [vmem:[#allocation3 + $0x20] sm:$0xff]
    %v34 = vld [vmem:[#allocation3 + $0x28] sm:$0xff]
    %35 = vxpose.xlu0.b32.start [1/16] %v29, 128
    %36 = vxpose.xlu0.b32.cont [2/16] %v30, 128
    %37 = vxpose.xlu0.b32.cont [3/16] %v31, 128
    %38 = vxpose.xlu0.b32.cont [4/16] %v32, 128
    %39 = vxpose.xlu0.b32.cont [5/16] %v33, 128
    %40 = vxpose.xlu0.b32.cont [6/16] %v34, 128
    %41 = vxpose.xlu0.b32.cont [7/16] 0.0, 128
    %42 = vxpose.xlu0.b32.cont [8/16] 0.0, 128
    %43 = vxpose.xlu0.b32.cont [9/16] 0.0, 128
    %44 = vxpose.xlu0.b32.cont [10/16] 0.0, 128
    %45 = vxpose.xlu0.b32.cont [11/16] 0.0, 128
    %46 = vxpose.xlu0.b32.cont [12/16] 0.0, 128
    %47 = vxpose.xlu0.b32.cont [13/16] 0.0, 128
    %48 = vxpose.xlu0.b32.cont [14/16] 0.0, 128
    %49 = vxpose.xlu0.b32.cont [15/16] 0.0, 128
    %50 = vxpose.xlu0.b32.end [16/16] 0.0, 128
    %v51 = vpop.trf.xlu0
    %v52 = vpop.trf.xlu0
    %v53 = vpop.trf.xlu0
    %v54 = vpop.trf.xlu0
    %v55 = vpop.trf.xlu0
    %v56 = vpop.trf.xlu0
    %v57 = vpop.trf.xlu0
    %v58 = vpop.trf.xlu0
    %v59 = vpop.trf.xlu0
    %v60 = vpop.trf.xlu0
    %v61 = vpop.trf.xlu0
    %v62 = vpop.trf.xlu0
    %v63 = vpop.trf.xlu0
    %v64 = vpop.trf.xlu0
    %v65 = vpop.trf.xlu0
    %v66 = vpop.trf.xlu0
    %v67 = vld [vmem:[%s1] sm:$0xff]
    %v68 = vld [vmem:[%s1 + $0x8] sm:$0x3]
    %70 = vset.pattern.permute.xlu0 0
    %71 = vperm.xlu0 %70, %v67
    %v72 = vpop.permute.xlu0 %71
    %75 = vset.pattern.permute.xlu0 0
    %76 = vperm.xlu0 %75, %v68
    %v77 = vpop.permute.xlu0 %76
    %v79 = vmul.f32 %v51, %v72
    %v80 = vmul.f32 %v52, %v77
    %vm81 = vcmask 392192
    %v82 = vsel %vm81, %v79, 0.0
    %vm83 = vcmask 386048
    %v84 = vsel %vm83, %v80, 0.0
    %v85 = vadd.f32 %v82, %v84
    %v86 = vrot.slane %v85, 4
    %v87 = vadd.f32 %v85, %v86
    %v88 = vrot.slane %v87, 2
    %v89 = vadd.f32 %v87, %v88
    %v90 = vrot.slane %v89, 1
    %v91 = vadd.f32 %v89, %v90
    %s92 = sld [smem:[#allocation2]]
    %v93 = vstv %s92
    %v94 = vadd.f32 %v91, %v93
    %vm95 = vcmask 385024
    %96 = vst.msk [vmem:[%s3] sm:$0x1] %vm95, %v94
    // Predicated region
    $region18: #{net_forward.1} parent=1 // pred_check
      _
    $region19: #{net_forward.1} parent=1 // pred_check_branch
      %98 = sbr.rel (0) target = $region21
    $region20: #{net_forward.1} parent=1 // pred_region
      _
    $region21: #{net_forward.1} parent=1 // pred_fallthru
      _
    // Predicated region
    $region22: #{net_forward.1} parent=1 // pred_check
      _
    $region23: #{net_forward.1} parent=1 // pred_check_branch
      %100 = sbr.rel (0) target = $region25
    $region24: #{net_forward.1} parent=1 // pred_region
      _
    $region25: #{net_forward.1} parent=1 // pred_fallthru
      _
    %101 = vsyncpa [#allocation4], 1

</llo_original>
